<compile_context>
chip_gen: v6e
topology: v6e:2x2x1
jax: 0.10.0
libtpu: 0.0.40
codegen_flags: <defaults>
</compile_context>

<pallas_src>
import jax
import jax.numpy as jnp
from jax.experimental import pallas as pl
from jax.experimental.pallas import tpu as pltpu


def _round_up(x, m):
    return ((x + m - 1) // m) * m


def _down_mse_kernel(gt_ref, dmap_ref, pw_ref, out_ref):
    # gt_ref   : (TB*Rg, Wf)  native-dtype, lane-repacked ground-truth rows
    # dmap_ref : (TB*Hp, wp)  predicted (already downsampled) rows
    # pw_ref   : (Wf, wp)     0/1 sum-pooling matrix (lane groups -> output cols), f32
    # out_ref  : (1, 8, 128)  lane-dense per-step partial sum (broadcast scalar)
    tbrg, wf = gt_ref.shape
    tbhp, wp = dmap_ref.shape
    size_f = tbrg // tbhp  # packed rows per pooling group

    # H-pool first, accumulating in f32 straight from the native-dtype tile
    # (no full-tile f32 widen).  This shrinks the matmul LHS by `size_f`.
    pooled_h = jnp.sum(
        gt_ref[...].reshape(tbhp, size_f, wf), axis=1, dtype=jnp.float32
    )                                                                # (TB*Hp, Wf)

    # W-pool (plus the folded lane-group combine) on the MXU.
    pooled = jnp.dot(pooled_h, pw_ref[...],
                     preferred_element_type=jnp.float32)             # (TB*Hp, wp)

    err = dmap_ref[...].astype(jnp.float32) - pooled
    partial = jnp.sum(err * err)

    # Lane-dense unmasked store; column [0, 0] is read back outside the kernel.
    out_ref[...] = jnp.full(out_ref.shape, partial, jnp.float32)


def down_mse_loss(dmap, gt_density, size=8):
    """Pallas implementation of DownMSELoss.forward (returns a scalar f32)."""
    b, c, hp, wp = dmap.shape
    bg, cg, H, W = gt_density.shape
    assert (b, c) == (bg, cg)
    assert H == hp * size and W == wp * size, "gt_density must be size-times larger spatially"

    N = b * c

    # ---- lane repack: fold f rows (f | size) into the lane axis when W < 128 ----
    f = 1
    if W < 128:
        cands = [d for d in range(1, size + 1) if size % d == 0 and d * W <= 512]
        exact = [d for d in cands if (d * W) % 128 == 0]
        f = max(exact) if exact else max(cands)
    Wf = f * W            # lanes after repack
    Rg = H // f           # packed rows per plane (Rg = hp * (size // f))

    gt_itemsize = gt_density.dtype.itemsize
    dm_itemsize = dmap.dtype.itemsize

    # ---- per-plane VMEM footprint, lane-padded to 128, double-buffer aware ----
    gt_pp = Rg * _round_up(Wf, 128) * gt_itemsize
    dm_pp = hp * _round_up(wp, 128) * dm_itemsize
    f32_pp = hp * (_round_up(Wf, 128) + _round_up(wp, 128)) * 4      # intermediates
    per_plane = 2 * gt_pp + 2 * dm_pp + 2 * f32_pp

    try:
        vmem_cap = pltpu.get_tpu_info().vmem_capacity_bytes
    except Exception:
        vmem_cap = 64 * 1024 * 1024  # conservative (v7x-sized) fallback
    vmem_target = min(vmem_cap // 2, 40 * 1024 * 1024)
    tb_cap = max(1, vmem_target // per_plane)

    # ---- TB must divide N (no jnp.pad HBM copy) and keep 2-D blocks
    # sublane-aligned whenever the grid has more than one step. ----
    divisors = [d for d in range(1, N + 1) if N % d == 0]
    aligned = [d for d in divisors if d == N or (d * hp) % 8 == 0]
    fitting = [d for d in aligned if d <= tb_cap]
    if fitting:
        TB = max(fitting)
    else:
        # TODO(synk): ragged-tail masking would allow a non-divisor TB here;
        # fall back to the smallest aligned divisor (may exceed the soft budget).
        TB = min(aligned)
    # v7x: a single-step grid leaves one TensorCore idle; split if each half-step
    # still moves a healthy tile.
    if TB == N and N > 1:
        half = [d for d in aligned if d < N and d * per_plane >= 4 * 1024 * 1024]
        if half:
            TB = max(half)
    G = N // TB

    # ---- flatten with free contiguous reshapes only (no padding / HBM copies) ----
    gt2 = gt_density.reshape(N * Rg, Wf)
    dm2 = dmap.reshape(N * hp, wp)

    # Combined lane-fold + W sum-pooling matrix (0/1).  Column j of the output
    # collects lanes l with (l % W) // size == j (all folded rows of a packed row
    # belong to the same H-pooling group because f | size).
    cols = jnp.arange(Wf) % W
    pw = ((cols // size)[:, None] == jnp.arange(wp)[None, :]).astype(jnp.float32)

    needed = (TB * per_plane
              + 2 * Wf * _round_up(wp, 128) * 4        # pw (double-buffered)
              + 2 * 8 * 128 * 4)                        # out blocks
    vmem_limit = int(min(0.85 * vmem_cap, max(1.5 * needed, 32 * 1024 * 1024)))
    vmem_limit = max(vmem_limit, int(needed))

    out = pl.pallas_call(
        _down_mse_kernel,
        out_shape=jax.ShapeDtypeStruct((G, 8, 128), jnp.float32),
        grid_spec=pltpu.PrefetchScalarGridSpec(
            num_scalar_prefetch=0,
            grid=(G,),
            in_specs=[
                pl.BlockSpec((TB * Rg, Wf), lambda i: (i, 0)),
                pl.BlockSpec((TB * hp, wp), lambda i: (i, 0)),
                pl.BlockSpec((Wf, wp), lambda i: (0, 0)),
            ],
            out_specs=pl.BlockSpec((1, 8, 128), lambda i: (i, 0, 0)),
        ),
        compiler_params=pltpu.CompilerParams(
            dimension_semantics=("parallel",),
            vmem_limit_bytes=vmem_limit,
        ),
    )(gt2, dm2, pw)

    # Final reduction over per-step partials (once, outside the kernel).
    return jnp.sum(out[:, 0, 0])


def _reference(dmap, gt_density, size=8):
    b, c, H, W = gt_density.shape
    hp, wp = H // size, W // size
    pooled = gt_density.reshape(b, c, hp, size, wp, size).sum(axis=(3, 5))
    return jnp.sum((dmap.astype(jnp.float32) - pooled.astype(jnp.float32)) ** 2)


if __name__ == "__main__":
    size = 8
    B, C, H, W = 2, 4, 16, 16
    Hp, Wp = H // size, W // size

    key = jax.random.PRNGKey(0)
    k1, k2 = jax.random.split(key)
    gt_density = jax.random.uniform(k1, (B, C, H, W), dtype=jnp.float32)
    dmap = jax.random.uniform(k2, (B, C, Hp, Wp), dtype=jnp.float32) * 10.0

    loss = down_mse_loss(dmap, gt_density, size=size)
    loss = jax.block_until_ready(loss)

    ref = _reference(dmap, gt_density, size=size)
    assert jnp.allclose(loss, ref, rtol=1e-5, atol=1e-5), (loss, ref)

    print("KERNEL_OK")
</pallas_src>

<mosaic_0001>
module attributes {stable_mosaic.version = 11 : i64} {
  func.func @_down_mse_kernel(%arg0: i32, %arg1: memref<16x128xf32, #tpu.memory_space<vmem>>, %arg2: memref<16x2xf32, #tpu.memory_space<vmem>>, %arg3: memref<128x2xf32, #tpu.memory_space<vmem>>, %arg4: memref<1x8x128xf32, #tpu.memory_space<vmem>>) attributes {dimension_semantics = [#tpu.dimension_semantics<parallel>], iteration_bounds = array<i64: 1>, scalar_prefetch = 0 : i64, scratch_operands = 0 : i64, tpu.core_type = #tpu.core_type<tc>, window_params = [{transform_indices = @transform_0, window_bounds = array<i64: 16, 128>}, {transform_indices = @transform_1, window_bounds = array<i64: 16, 2>}, {pipeline_mode = #tpu.pipeline_mode<synchronous>, transform_indices = @transform_2, window_bounds = array<i64: 128, 2>}, {transform_indices = @transform_3, window_bounds = array<i64: 1, 8, 128>}]} {
    %c0 = arith.constant 0 : index
    %c0_0 = arith.constant 0 : index
    %0 = vector.load %arg1[%c0, %c0_0] : memref<16x128xf32, #tpu.memory_space<vmem>>, vector<16x128xf32>
    %1 = vector.shape_cast %0 : vector<16x128xf32> to vector<16x1x128xf32>
    %cst = arith.constant dense<0.000000e+00> : vector<16x128xf32>
    %2 = vector.multi_reduction <add>, %1, %cst [1] : vector<16x1x128xf32> to vector<16x128xf32>
    %c0_1 = arith.constant 0 : index
    %c0_2 = arith.constant 0 : index
    %3 = vector.load %arg3[%c0_1, %c0_2] : memref<128x2xf32, #tpu.memory_space<vmem>>, vector<128x2xf32>
    %cst_3 = arith.constant dense<0.000000e+00> : vector<16x2xf32>
    %4 = tpu.matmul %2, %3, %cst_3 {dimension_numbers = #tpu.dot_dimension_numbers<[1], [0], [0], [1], [0, 0, 1, 1], [], []>} : vector<16x128xf32>, vector<128x2xf32>, vector<16x2xf32> -> vector<16x2xf32>
    %c0_4 = arith.constant 0 : index
    %c0_5 = arith.constant 0 : index
    %5 = vector.load %arg2[%c0_4, %c0_5] : memref<16x2xf32, #tpu.memory_space<vmem>>, vector<16x2xf32>
    %6 = arith.subf %5, %4 : vector<16x2xf32>
    %7 = arith.mulf %6, %6 : vector<16x2xf32>
    %8 = vector.shape_cast %7 : vector<16x2xf32> to vector<1x16x2xf32>
    %cst_6 = arith.constant dense<0.000000e+00> : vector<1xf32>
    %9 = vector.multi_reduction <add>, %8, %cst_6 [1, 2] : vector<1x16x2xf32> to vector<1xf32>
    %10 = vector.shape_cast %9 : vector<1xf32> to vector<1x1x1xf32>
    %11 = vector.extract %10[0, 0, 0] : f32 from vector<1x1x1xf32>
    %12 = vector.broadcast %11 : f32 to vector<1x8x128xf32>
    %c0_7 = arith.constant 0 : index
    %c0_8 = arith.constant 0 : index
    %c0_9 = arith.constant 0 : index
    %13 = vector.load %arg4[%c0_7, %c0_8, %c0_9] : memref<1x8x128xf32, #tpu.memory_space<vmem>>, vector<1x8x128xf32>
    tpu.vector_store %arg4[%c0_7, %c0_8, %c0_9], %12 {strides = array<i32>} : memref<1x8x128xf32, #tpu.memory_space<vmem>>, vector<1x8x128xf32>,
    return
  }
  func.func @transform_0(%arg0: i32) -> (i32, i32) {
    %c0_i32 = arith.constant 0 : i32
    %c0_i32_0 = arith.constant 0 : i32
    return %arg0, %c0_i32 : i32, i32
  }
  func.func @transform_1(%arg0: i32) -> (i32, i32) {
    %c0_i32 = arith.constant 0 : i32
    %c0_i32_0 = arith.constant 0 : i32
    return %arg0, %c0_i32 : i32, i32
  }
  func.func @transform_2(%arg0: i32) -> (i32, i32) {
    %c0_i32 = arith.constant 0 : i32
    %c0_i32_0 = arith.constant 0 : i32
    %c0_i32_1 = arith.constant 0 : i32
    return %c0_i32, %c0_i32_0 : i32, i32
  }
  func.func @transform_3(%arg0: i32) -> (i32, i32, i32) {
    %c0_i32 = arith.constant 0 : i32
    %c0_i32_0 = arith.constant 0 : i32
    %c0_i32_1 = arith.constant 0 : i32
    return %arg0, %c0_i32, %c0_i32_0 : i32, i32, i32
  }
}

</mosaic_0001>

<llo_original>
// kernel: tpu_custom_call.1
$region0: #{tpu_custom_call.1}
  #allocation0 [shape = 'u32[]', space=smem, size = 0x4, offset = 0x4, fixed_abs, tag = 'smem constant byte address 0x4 - core index']
  #allocation1 [shape = 'u32[144,128]{1,0:T(1,128)}', space=vmem, size = 0x12000, scoped, tag = 'internal scratch']
  %s0 = inlined_call_operand.vmem [shape: f32[16,128], index: 0, kind: input, shape index: {}]
  %s1 = inlined_call_operand.vmem [shape: f32[16,2], index: 1, kind: input, shape index: {}]
  %s2 = inlined_call_operand.vmem [shape: f32[128,2], index: 2, kind: input, shape index: {}]
  %s3 = inlined_call_operand.hbm [shape: f32[1,8,128], index: 3, kind: output, shape index: {}]
  %s4 = sld [smem:[#allocation0]]
  $region22: #{tpu_custom_call.1} parent=0
    _
  %s6 = ssub.s32 1, %s4
  %s7 = scalar_select 0, %s6, %s4
  $region1: #{tpu_custom_call.1} parent=0
    #allocation2 [shape = 'u8[4096]{0}', space=vmem, size = 0x1000, scoped, tag = 'output window, operand 0, single buffered']
    #allocation3 [shape = 's32[1]{0}', space=sflag, size = 0x4, scoped, tag = 'scoped memory for tpu_custom_call.1']
    %8 = vsyncpa [#allocation3], 0
    // Predicated region
    $region2: #{tpu_custom_call.1} parent=1 // pred_check
      _
    $region3: #{tpu_custom_call.1} parent=1 // pred_check_branch
      %10 = sbr.rel (0) target = $region5
    $region4: #{tpu_custom_call.1} parent=1 // pred_region
      _
    $region5: #{tpu_custom_call.1} parent=1 // pred_fallthru
      _
    // Predicated region
    $region6: #{tpu_custom_call.1} parent=1 // pred_check
      _
    $region7: #{tpu_custom_call.1} parent=1 // pred_check_branch
      %12 = sbr.rel (0) target = $region9
    $region8: #{tpu_custom_call.1} parent=1 // pred_region
      _
    $region9: #{tpu_custom_call.1} parent=1 // pred_fallthru
      _
    // Predicated region
    $region10: #{tpu_custom_call.1} parent=1 // pred_check
      _
    $region11: #{tpu_custom_call.1} parent=1 // pred_check_branch
      %14 = sbr.rel (0) target = $region13
    $region12: #{tpu_custom_call.1} parent=1 // pred_region
      _
    $region13: #{tpu_custom_call.1} parent=1 // pred_fallthru
      _
    %v15 = vld [vmem:[%s0] sm:$0xff]
    %v16 = vld [vmem:[%s0 + $0x8] sm:$0xff]
    %v17 = vadd.f32 %v15, 0.0
    %v18 = vadd.f32 %v16, 0.0
    %v19 = vld [vmem:[%s2] sm:$0xff]
    %v20 = vld [vmem:[%s2 + $0x8] sm:$0xff]
    %v21 = vld [vmem:[%s2 + $0x10] sm:$0xff]
    %v22 = vld [vmem:[%s2 + $0x18] sm:$0xff]
    %v23 = vld [vmem:[%s2 + $0x20] sm:$0xff]
    %v24 = vld [vmem:[%s2 + $0x28] sm:$0xff]
    %v25 = vld [vmem:[%s2 + $0x30] sm:$0xff]
    %v26 = vld [vmem:[%s2 + $0x38] sm:$0xff]
    %v27 = vld [vmem:[%s2 + $0x40] sm:$0xff]
    %v28 = vld [vmem:[%s2 + $0x48] sm:$0xff]
    %v29 = vld [vmem:[%s2 + $0x50] sm:$0xff]
    %v30 = vld [vmem:[%s2 + $0x58] sm:$0xff]
    %v31 = vld [vmem:[%s2 + $0x60] sm:$0xff]
    %v32 = vld [vmem:[%s2 + $0x68] sm:$0xff]
    %v33 = vld [vmem:[%s2 + $0x70] sm:$0xff]
    %v34 = vld [vmem:[%s2 + $0x78] sm:$0xff]
    %35 = vmatprep.subr.mxu0 0.0
    %36 = vmatpush1.msra.mxu0 %v34
    %37 = vmatprep.subr.mxu0 0.0
    %38 = vmatpush1.msra.mxu0 %v33
    %39 = vmatprep.subr.mxu0 0.0
    %40 = vmatpush1.msra.mxu0 %v32
    %41 = vmatprep.subr.mxu0 0.0
    %42 = vmatpush1.msra.mxu0 %v31
    %43 = vmatprep.subr.mxu0 0.0
    %44 = vmatpush1.msra.mxu0 %v30
    %45 = vmatprep.subr.mxu0 0.0
    %46 = vmatpush1.msra.mxu0 %v29
    %47 = vmatprep.subr.mxu0 0.0
    %48 = vmatpush1.msra.mxu0 %v28
    %49 = vmatprep.subr.mxu0 0.0
    %50 = vmatpush1.msra.mxu0 %v27
    %51 = vmatprep.subr.mxu0 0.0
    %52 = vmatpush1.msra.mxu0 %v26
    %53 = vmatprep.subr.mxu0 0.0
    %54 = vmatpush1.msra.mxu0 %v25
    %55 = vmatprep.subr.mxu0 0.0
    %56 = vmatpush1.msra.mxu0 %v24
    %57 = vmatprep.subr.mxu0 0.0
    %58 = vmatpush1.msra.mxu0 %v23
    %59 = vmatprep.subr.mxu0 0.0
    %60 = vmatpush1.msra.mxu0 %v22
    %61 = vmatprep.subr.mxu0 0.0
    %62 = vmatpush1.msra.mxu0 %v21
    %63 = vmatprep.subr.mxu0 0.0
    %64 = vmatpush1.msra.mxu0 %v20
    %65 = vmatprep.subr.mxu0 0.0
    %66 = vmatpush1.msra.mxu0 %v19
    %67 = vmatprep.subr.mxu0 0.0
    %68 = vmatpush2.msra.mxu0 0.0
    %69 = vmatprep.subr.mxu0 0.0
    %70 = vmatpush2.msra.mxu0 0.0
    %71 = vmatprep.subr.mxu0 0.0
    %72 = vmatpush2.msra.mxu0 0.0
    %73 = vmatprep.subr.mxu0 0.0
    %74 = vmatpush2.msra.mxu0 0.0
    %75 = vmatprep.subr.mxu0 0.0
    %76 = vmatpush2.msra.mxu0 0.0
    %77 = vmatprep.subr.mxu0 0.0
    %78 = vmatpush2.msra.mxu0 0.0
    %79 = vmatprep.subr.mxu0 0.0
    %80 = vmatpush2.msra.mxu0 0.0
    %81 = vmatprep.subr.mxu0 0.0
    %82 = vmatpush2.msra.mxu0 0.0
    %83 = vmatprep.subr.mxu0 0.0
    %84 = vmatpush2.msra.mxu0 0.0
    %85 = vmatprep.subr.mxu0 0.0
    %86 = vmatpush2.msra.mxu0 0.0
    %87 = vmatprep.subr.mxu0 0.0
    %88 = vmatpush2.msra.mxu0 0.0
    %89 = vmatprep.subr.mxu0 0.0
    %90 = vmatpush2.msra.mxu0 0.0
    %91 = vmatprep.subr.mxu0 0.0
    %92 = vmatpush2.msra.mxu0 0.0
    %93 = vmatprep.subr.mxu0 0.0
    %94 = vmatpush2.msra.mxu0 0.0
    %95 = vmatprep.subr.mxu0 0.0
    %96 = vmatpush2.msra.mxu0 0.0
    %97 = vmatprep.subr.mxu0 0.0
    %98 = vmatpush2.msra.mxu0 0.0
    %99 = vmatprep.mubr.f32.mxu0 0.0
    %100 = vmatmul.mubr.f32.gmra.mxu0 %v17
    %v101 = vpop.f32.mrf.mxu0
    %v102 = vadd.f32 0.0, %v101
    %v103 = vpop.f32.mrf.mxu0
    %104 = vmatprep.mubr.f32.mxu0 0.0
    %105 = vmatmul.mubr.f32.gmra.mxu0 %v18
    %v106 = vpop.f32.mrf.mxu0
    %v107 = vadd.f32 0.0, %v106
    %v108 = vpop.f32.mrf.mxu0
    %109 = vdwg.mxu0
    %v110 = vld [vmem:[%s1] sm:$0xff]
    %v111 = vld [vmem:[%s1 + $0x8] sm:$0xff]
    %v112 = vsub.f32 %v110, %v102
    %v113 = vsub.f32 %v111, %v107
    %v114 = vmul.f32 %v112, %v112
    %v115 = vmul.f32 %v113, %v113
    %vm116 = vcmask 15360
    %v117 = vsel %vm116, %v114, 0.0
    %v118 = vsel %vm116, %v115, 0.0
    %v119 = vadd.f32 %v117, %v118
    %120 = vadd.xlane.f32.xlu0 %v119
    %v121 = vpop.xlane.xlu0 %120
    %v122 = vrot.slane %v121, 4
    %v123 = vadd.f32 %v121, %v122
    %v124 = vrot.slane %v123, 2
    %v125 = vadd.f32 %v123, %v124
    %v126 = vrot.slane %v125, 1
    %v127 = vadd.f32 %v125, %v126
    %s128 = vtos %v127
    %v129 = vstv %s128
    %130 = vst [vmem:[#allocation2] sm:$0xff] %v129
    // Predicated region
    $region14: #{tpu_custom_call.1} parent=1 // pred_check
      _
    $region15: #{tpu_custom_call.1} parent=1 // pred_check_branch
      %132 = sbr.rel (0) target = $region17
    $region16: #{tpu_custom_call.1} parent=1 // pred_region
      %s134 = ssub.s32 128, 128
      %135 = vsyncadd [#allocation3], %s134
      %s137 = sshll.u32 [#allocation2], 4
      %s138 = int_to_ptr.vmem [resolvable:$true] %s137
      %140 = dma.vmem_to_hbm [thread:$0]  %s138, 128, %s3, [#allocation3]
    $region17: #{tpu_custom_call.1} parent=1 // pred_fallthru
      _
    // Predicated region
    $region18: #{tpu_custom_call.1} parent=1 // pred_check
      _
    $region19: #{tpu_custom_call.1} parent=1 // pred_check_branch
      %142 = sbr.rel (0) target = $region21
    $region20: #{tpu_custom_call.1} parent=1 // pred_region
      %143 = dma.done [#allocation3], 128
    $region21: #{tpu_custom_call.1} parent=1 // pred_fallthru
      _
    %144 = vsyncpa [#allocation3], 1

</llo_original>
